<compile_context>
chip_gen: v6e
topology: v6e:2x2x1
jax: 0.10.0
libtpu: 0.0.40
codegen_flags: <defaults>
</compile_context>

<pallas_src>
import functools

import numpy as np
import jax
import jax.numpy as jnp
from jax import lax
from jax.experimental import pallas as pl
from jax.experimental.pallas import tpu as pltpu


_VMEM_LIMIT = 32 * 1024 * 1024   # fits the scoped-VMEM defaults on v5e/v6e/v7x


def _apply_act(acc, act):
    if act == "relu":
        return jnp.maximum(acc, 0.0)
    if act == "tanh":
        return jnp.tanh(acc)
    return acc


# ----------------------------------------------------------------------------
# Kernel 1: layer 0.  ConvTranspose2d(nz, cngf, 4, 1, 0) on a 1x1 input is a
# dense projection (N, nz) @ (nz, 4*4*cngf), fused with ReLU.
# ----------------------------------------------------------------------------
def _projection_kernel(x_ref, w_ref, o_ref, *, act):
    acc = jnp.dot(x_ref[...], w_ref[...], preferred_element_type=jnp.float32)
    o_ref[...] = _apply_act(acc, act).astype(o_ref.dtype)


def projection(x2d, w_mat, act, out_dtype):
    n = x2d.shape[0]
    cols = w_mat.shape[1]
    return pl.pallas_call(
        functools.partial(_projection_kernel, act=act),
        out_shape=jax.ShapeDtypeStruct((n, cols), out_dtype),
        compiler_params=pltpu.CompilerParams(vmem_limit_bytes=_VMEM_LIMIT),
    )(x2d, w_mat)


# ----------------------------------------------------------------------------
# Kernel 2: generic stride-1 "window" conv with fused activation.
#   x_ref : (1, Hp, Wp, Cin)        one (padded) image, batch-blocked
#   w_ref : (KH*KW, Cin, Cout_eff)  per-tap weight matrices
#   o_ref : (1, TILE_OH, OW, Cout_eff)
# Used both for the 3x3 Conv2d extra layers (Cout_eff = Cout) and for the
# phase-combined stride-2 transposed convs (Cout_eff = 4*Cout).
# ----------------------------------------------------------------------------
def _window_conv_kernel(x_ref, w_ref, o_ref, *, kh, kw, tile_oh, ow, act):
    oy0 = pl.multiple_of(pl.program_id(1) * tile_oh, tile_oh)
    cout = w_ref.shape[2]
    for t in range(tile_oh):                    # static unroll: rows of tile
        acc = jnp.zeros((ow, cout), jnp.float32)
        for dy in range(kh):
            for dx in range(kw):
                row = x_ref[0, oy0 + t + dy, pl.ds(dx, ow), :]      # (OW, Cin)
                acc = acc + jnp.dot(row, w_ref[dy * kw + dx, :, :],
                                    preferred_element_type=jnp.float32)
        # activation on the f32 accumulator; cast only at the store.
        o_ref[0, t] = _apply_act(acc, act).astype(o_ref.dtype)


def window_conv(xp, w_taps, kh, kw, act, out_dtype):
    n, hp, wp, cin = xp.shape
    ntaps, _, cout = w_taps.shape
    assert ntaps == kh * kw
    oh, ow = hp - kh + 1, wp - kw + 1
    tile_oh = next(t for t in (8, 4, 2, 1) if oh % t == 0)
    kernel = functools.partial(_window_conv_kernel,
                               kh=kh, kw=kw, tile_oh=tile_oh, ow=ow, act=act)
    return pl.pallas_call(
        kernel,
        out_shape=jax.ShapeDtypeStruct((n, oh, ow, cout), out_dtype),
        grid=(n, oh // tile_oh),
        in_specs=[
            pl.BlockSpec((1, hp, wp, cin), lambda i, j: (i, 0, 0, 0)),
            pl.BlockSpec((ntaps, cin, cout), lambda i, j: (0, 0, 0)),
        ],
        out_specs=pl.BlockSpec((1, tile_oh, ow, cout),
                               lambda i, j: (i, j, 0, 0)),
        compiler_params=pltpu.CompilerParams(
            dimension_semantics=("parallel", "parallel"),
            vmem_limit_bytes=_VMEM_LIMIT),
    )(xp, w_taps)


# ----------------------------------------------------------------------------
# Weight preparation (plain-JAX glue, done once per layer per forward).
# ----------------------------------------------------------------------------
def _convt421_phase_weight(w_t):
    """ConvTranspose2d weight (Cin, Cout, 4, 4), stride 2, padding 1 ->
    per-tap weights (9, Cin, 4*Cout) for a 3x3 window over the 1-padded input.
    Output channels are ordered (py, px, cout): position (ty, tx) of the kernel
    output holds out[2*ty+py, 2*tx+px, cout]."""
    cin, cout = w_t.shape[0], w_t.shape[1]
    wc = jnp.zeros((3, 3, cin, 2, 2, cout), w_t.dtype)
    for dy in range(3):
        for py in range(2):
            kh = 3 + py - 2 * dy
            if not 0 <= kh <= 3:
                continue
            for dx in range(3):
                for px in range(2):
                    kw = 3 + px - 2 * dx
                    if not 0 <= kw <= 3:
                        continue
                    wc = wc.at[dy, dx, :, py, px, :].set(w_t[:, :, kh, kw])
    return wc.reshape(9, cin, 4 * cout)


def _conv_weight(w):
    """Conv2d weight (Cout, Cin, KH, KW) -> (KH*KW, Cin, Cout)."""
    cout, cin, kh, kw = w.shape
    return jnp.transpose(w, (2, 3, 1, 0)).reshape(kh * kw, cin, cout)


# ----------------------------------------------------------------------------
# DCGAN_G_nobn: architecture + deterministic parameter init + forward.
# ----------------------------------------------------------------------------
def build_dcgan_g_nobn(key, isize, nz, nc, ngf, n_extra_layers=0):
    assert isize % 16 == 0, "isize has to be a multiple of 16"
    cngf, tisize = ngf // 2, 4
    while tisize != isize:
        cngf *= 2
        tisize *= 2

    # (kind, cin, cout, k, stride, pad, activation) -- mirrors the nn.Sequential
    cfg = [("convt", nz, cngf, 4, 1, 0, "relu")]
    csize, c = 4, cngf
    while csize < isize // 2:
        cfg.append(("convt", c, c // 2, 4, 2, 1, "relu"))
        c //= 2
        csize *= 2
    for _ in range(n_extra_layers):
        cfg.append(("conv", c, c, 3, 1, 1, "relu"))
    cfg.append(("convt", c, nc, 4, 2, 1, "tanh"))

    params = []
    for kind, cin, cout, k, _, _, _ in cfg:
        key, sub = jax.random.split(key)
        shape = (cin, cout, k, k) if kind == "convt" else (cout, cin, k, k)
        scale = 1.0 / float(np.sqrt(cin * k * k))
        params.append(scale * jax.random.normal(sub, shape, jnp.float32))
    return cfg, params


def dcgan_g_nobn_forward(x_nchw, cfg, params, compute_dtype=jnp.float32):
    """Pallas forward.  NCHW in, NCHW float32 out (matches the PyTorch module)."""
    cdt = compute_dtype
    x = jnp.transpose(x_nchw, (0, 2, 3, 1)).astype(cdt)          # NCHW -> NHWC
    for spec, w in zip(cfg, params):
        kind, cin, cout, k, stride, pad, act = spec
        if kind == "convt" and stride == 1 and pad == 0 \
                and x.shape[1] == 1 and x.shape[2] == 1:
            # layer 0: 1x1 spatial input -> dense projection onto k x k x cout
            n = x.shape[0]
            w_mat = jnp.transpose(w, (0, 2, 3, 1)).reshape(cin, k * k * cout)
            y = projection(x.reshape(n, cin), w_mat.astype(cdt), act, cdt)
            x = y.reshape(n, k, k, cout)
        elif kind == "convt":
            assert (k, stride, pad) == (4, 2, 1), "unsupported ConvTranspose2d"
            n, h, wd, _ = x.shape
            xp = jnp.pad(x, ((0, 0), (1, 1), (1, 1), (0, 0)))
            w_taps = _convt421_phase_weight(w).astype(cdt)       # (9, cin, 4*cout)
            y = window_conv(xp, w_taps, 3, 3, act, cdt)          # (N, H, W, 4*cout)
            y = y.reshape(n, h, wd, 2, 2, cout)                  # (..., py, px, c)
            y = jnp.transpose(y, (0, 1, 3, 2, 4, 5))             # pixel shuffle
            x = y.reshape(n, 2 * h, 2 * wd, cout)
            # TODO(synk): fuse the pixel-shuffle interleave into the kernel's
            # store (needs an in-kernel relayout) to save one small HBM pass.
        else:  # plain 3x3 Conv2d extra layer
            xp = jnp.pad(x, ((0, 0), (pad, pad), (pad, pad), (0, 0)))
            w_taps = _conv_weight(w).astype(cdt)                 # (k*k, cin, cout)
            x = window_conv(xp, w_taps, k, k, act, cdt)          # (N, H, W, cout)
    return jnp.transpose(x, (0, 3, 1, 2)).astype(jnp.float32)    # NHWC -> NCHW


# Plain-XLA reference used only for correctness checking.
def _reference_forward(x, cfg, params):
    dn = ("NCHW", "OIHW", "NCHW")
    for spec, w in zip(cfg, params):
        kind, _, _, k, stride, pad, act = spec
        if kind == "convt":
            w_oihw = jnp.transpose(jnp.flip(w, axis=(2, 3)), (1, 0, 2, 3))
            x = lax.conv_general_dilated(
                x, w_oihw, window_strides=(1, 1),
                padding=[(k - 1 - pad, k - 1 - pad)] * 2,
                lhs_dilation=(stride, stride), dimension_numbers=dn,
                precision=lax.Precision.HIGHEST)
        else:
            x = lax.conv_general_dilated(
                x, w, window_strides=(stride, stride),
                padding=[(pad, pad)] * 2, dimension_numbers=dn,
                precision=lax.Precision.HIGHEST)
        x = jnp.maximum(x, 0.0) if act == "relu" else jnp.tanh(x)
    return x


if __name__ == "__main__":
    # Small DCGAN_G_nobn: isize=16, nz=8, nc=3, ngf=8, 1 extra layer:
    #   convt(8->16, 4x4, s1, p0)+ReLU -> 4x4
    #   convt(16->8, 4x4, s2, p1)+ReLU -> 8x8
    #   conv (8->8,  3x3, s1, p1)+ReLU -> 8x8
    #   convt(8->3,  4x4, s2, p1)+Tanh -> 16x16
    isize, nz, nc, ngf, n_extra_layers = 16, 8, 3, 8, 1
    batch = 2

    key = jax.random.PRNGKey(0)
    key, kx = jax.random.split(key)
    x = jax.random.normal(kx, (batch, nz, 1, 1), jnp.float32)    # latent, NCHW
    cfg, params = build_dcgan_g_nobn(key, isize, nz, nc, ngf, n_extra_layers)

    # float32 operand path: check against the XLA reference.
    out = jax.block_until_ready(dcgan_g_nobn_forward(x, cfg, params, jnp.float32))
    assert out.shape == (batch, nc, isize, isize)
    ref = _reference_forward(x, cfg, params)
    np.testing.assert_allclose(np.asarray(out), np.asarray(ref),
                               atol=2e-2, rtol=2e-2)

    # bf16-operand path (v6e/v7x MXU config; f32 accumulation in-kernel):
    # compare against the reference evaluated with bf16-rounded params/input.
    out_bf16 = jax.block_until_ready(
        dcgan_g_nobn_forward(x, cfg, params, jnp.bfloat16))
    params_q = [p.astype(jnp.bfloat16).astype(jnp.float32) for p in params]
    x_q = x.astype(jnp.bfloat16).astype(jnp.float32)
    ref_q = _reference_forward(x_q, cfg, params_q)
    np.testing.assert_allclose(np.asarray(out_bf16), np.asarray(ref_q),
                               atol=5e-2, rtol=5e-2)

    print("KERNEL_OK")
</pallas_src>

<mosaic_0001>
module attributes {stable_mosaic.version = 11 : i64} {
  func.func @_projection_kernel(%arg0: memref<2x8xf32, #tpu.memory_space<vmem>>, %arg1: memref<8x256xf32, #tpu.memory_space<vmem>>, %arg2: memref<2x256xf32, #tpu.memory_space<vmem>>) attributes {dimension_semantics = [], scalar_prefetch = 0 : i64, scratch_operands = 0 : i64, tpu.core_type = #tpu.core_type<tc>} {
    %c0 = arith.constant 0 : index
    %c0_0 = arith.constant 0 : index
    %0 = vector.load %arg0[%c0, %c0_0] : memref<2x8xf32, #tpu.memory_space<vmem>>, vector<2x8xf32>
    %c0_1 = arith.constant 0 : index
    %c0_2 = arith.constant 0 : index
    %1 = vector.load %arg1[%c0_1, %c0_2] : memref<8x256xf32, #tpu.memory_space<vmem>>, vector<8x256xf32>
    %cst = arith.constant dense<0.000000e+00> : vector<2x256xf32>
    %2 = tpu.matmul %0, %1, %cst {dimension_numbers = #tpu.dot_dimension_numbers<[1], [0], [0], [1], [0, 0, 1, 1], [], []>} : vector<2x8xf32>, vector<8x256xf32>, vector<2x256xf32> -> vector<2x256xf32>
    %cst_3 = arith.constant 0.000000e+00 : f32
    %3 = vector.broadcast %cst_3 : f32 to vector<2x256xf32>
    %4 = arith.maximumf %2, %3 : vector<2x256xf32>
    %c0_4 = arith.constant 0 : index
    %c0_5 = arith.constant 0 : index
    %5 = vector.load %arg2[%c0_4, %c0_5] : memref<2x256xf32, #tpu.memory_space<vmem>>, vector<2x256xf32>
    tpu.vector_store %arg2[%c0_4, %c0_5], %4 {strides = array<i32>} : memref<2x256xf32, #tpu.memory_space<vmem>>, vector<2x256xf32>,
    return
  }
}

</mosaic_0001>

<llo_original>
// kernel: tpu_custom_call.1
$region0: #{tpu_custom_call.1}
  #allocation0 [shape = 'u32[]', space=smem, size = 0x4, offset = 0x4, fixed_abs, tag = 'smem constant byte address 0x4 - core index']
  #allocation1 [shape = 'u32[144,128]{1,0:T(1,128)}', space=vmem, size = 0x12000, scoped, tag = 'internal scratch']
  %s0 = inlined_call_operand.hbm [shape: f32[2,8], index: 0, kind: input, shape index: {}]
  %s1 = inlined_call_operand.hbm [shape: f32[8,256], index: 1, kind: input, shape index: {}]
  %s2 = inlined_call_operand.hbm [shape: f32[2,256], index: 2, kind: output, shape index: {}]
  %s3 = sld [smem:[#allocation0]]
  $region26: #{tpu_custom_call.1} parent=0
    _
  %s5 = ssub.s32 1, %s3
  %s6 = scalar_select 0, %s5, %s3
  $region1: #{tpu_custom_call.1} parent=0
    #allocation2 [shape = 'u8[1024]{0}', space=vmem, size = 0x400, scoped, tag = 'input window, operand 0, single buffered']
    #allocation3 [shape = 's32[1]{0}', space=sflag, size = 0x4, scoped, tag = 'scoped memory for tpu_custom_call.1']
    #allocation4 [shape = 's32[1]{0}', space=sflag, size = 0x4, scoped, tag = 'scoped memory for tpu_custom_call.1']
    #allocation5 [shape = 'u8[8192]{0}', space=vmem, size = 0x2000, scoped, tag = 'input window, operand 1, single buffered']
    #allocation6 [shape = 's32[1]{0}', space=sflag, size = 0x4, scoped, tag = 'scoped memory for tpu_custom_call.1']
    #allocation7 [shape = 'u8[2048]{0}', space=vmem, size = 0x800, scoped, tag = 'output window, operand 0, single buffered']
    %7 = vsyncpa [#allocation3], 0
    %8 = vsyncpa [#allocation6], 0
    %9 = vsyncpa [#allocation4], 0
    // Predicated region
    $region2: #{tpu_custom_call.1} parent=1 // pred_check
      _
    $region3: #{tpu_custom_call.1} parent=1 // pred_check_branch
      %11 = sbr.rel (0) target = $region5
    $region4: #{tpu_custom_call.1} parent=1 // pred_region
      %s13 = ssub.s32 32, 32
      %14 = vsyncadd [#allocation3], %s13
      %s16 = sshll.u32 [#allocation2], 4
      %s17 = int_to_ptr.vmem [resolvable:$true] %s16
      %19 = dma.hbm_to_vmem [thread:$0]  %s0, 32, %s17, [#allocation3]
    $region5: #{tpu_custom_call.1} parent=1 // pred_fallthru
      _
    // Predicated region
    $region6: #{tpu_custom_call.1} parent=1 // pred_check
      _
    $region7: #{tpu_custom_call.1} parent=1 // pred_check_branch
      %21 = sbr.rel (0) target = $region9
    $region8: #{tpu_custom_call.1} parent=1 // pred_region
      %s23 = ssub.s32 256, 256
      %24 = vsyncadd [#allocation6], %s23
      %s26 = sshll.u32 [#allocation5], 4
      %s27 = int_to_ptr.vmem [resolvable:$true] %s26
      %29 = dma.hbm_to_vmem [thread:$0]  %s1, 256, %s27, [#allocation6]
    $region9: #{tpu_custom_call.1} parent=1 // pred_fallthru
      _
    // Predicated region
    $region10: #{tpu_custom_call.1} parent=1 // pred_check
      _
    $region11: #{tpu_custom_call.1} parent=1 // pred_check_branch
      %31 = sbr.rel (0) target = $region13
    $region12: #{tpu_custom_call.1} parent=1 // pred_region
      %32 = dma.done [#allocation3], 32
    $region13: #{tpu_custom_call.1} parent=1 // pred_fallthru
      _
    // Predicated region
    $region14: #{tpu_custom_call.1} parent=1 // pred_check
      _
    $region15: #{tpu_custom_call.1} parent=1 // pred_check_branch
      %34 = sbr.rel (0) target = $region17
    $region16: #{tpu_custom_call.1} parent=1 // pred_region
      %35 = dma.done [#allocation6], 256
    $region17: #{tpu_custom_call.1} parent=1 // pred_fallthru
      _
    %v36 = vld [vmem:[#allocation2] sm:$0x3]
    %v37 = vld [vmem:[#allocation5] sm:$0xff]
    %v38 = vld [vmem:[#allocation5 + $0x8] sm:$0xff]
    %vm39 = vcmask 64512
    %v41 = vsel %vm39, %v36, 0
    %43 = vmatprep.subr.mxu0 0.0
    %44 = vmatpush1.msra.mxu0 0.0
    %45 = vmatprep.subr.mxu0 0.0
    %46 = vmatpush1.msra.mxu0 0.0
    %47 = vmatprep.subr.mxu0 0.0
    %48 = vmatpush1.msra.mxu0 0.0
    %49 = vmatprep.subr.mxu0 0.0
    %50 = vmatpush1.msra.mxu0 0.0
    %51 = vmatprep.subr.mxu0 0.0
    %52 = vmatpush1.msra.mxu0 0.0
    %53 = vmatprep.subr.mxu0 0.0
    %54 = vmatpush1.msra.mxu0 0.0
    %55 = vmatprep.subr.mxu0 0.0
    %56 = vmatpush1.msra.mxu0 0.0
    %57 = vmatprep.subr.mxu0 0.0
    %58 = vmatpush1.msra.mxu0 0.0
    %59 = vmatprep.subr.mxu0 0.0
    %60 = vmatpush1.msra.mxu0 0.0
    %61 = vmatprep.subr.mxu0 0.0
    %62 = vmatpush1.msra.mxu0 0.0
    %63 = vmatprep.subr.mxu0 0.0
    %64 = vmatpush1.msra.mxu0 0.0
    %65 = vmatprep.subr.mxu0 0.0
    %66 = vmatpush1.msra.mxu0 0.0
    %67 = vmatprep.subr.mxu0 0.0
    %68 = vmatpush1.msra.mxu0 0.0
    %69 = vmatprep.subr.mxu0 0.0
    %70 = vmatpush1.msra.mxu0 0.0
    %71 = vmatprep.subr.mxu0 0.0
    %72 = vmatpush1.msra.mxu0 0.0
    %73 = vmatprep.subr.mxu0 %v38
    %74 = vmatpush1.msra.mxu0 %v37
    %75 = vmatprep.subr.mxu0 0.0
    %76 = vmatpush2.msra.mxu0 0.0
    %77 = vmatprep.subr.mxu0 0.0
    %78 = vmatpush2.msra.mxu0 0.0
    %79 = vmatprep.subr.mxu0 0.0
    %80 = vmatpush2.msra.mxu0 0.0
    %81 = vmatprep.subr.mxu0 0.0
    %82 = vmatpush2.msra.mxu0 0.0
    %83 = vmatprep.subr.mxu0 0.0
    %84 = vmatpush2.msra.mxu0 0.0
    %85 = vmatprep.subr.mxu0 0.0
    %86 = vmatpush2.msra.mxu0 0.0
    %87 = vmatprep.subr.mxu0 0.0
    %88 = vmatpush2.msra.mxu0 0.0
    %89 = vmatprep.subr.mxu0 0.0
    %90 = vmatpush2.msra.mxu0 0.0
    %91 = vmatprep.subr.mxu0 0.0
    %92 = vmatpush2.msra.mxu0 0.0
    %93 = vmatprep.subr.mxu0 0.0
    %94 = vmatpush2.msra.mxu0 0.0
    %95 = vmatprep.subr.mxu0 0.0
    %96 = vmatpush2.msra.mxu0 0.0
    %97 = vmatprep.subr.mxu0 0.0
    %98 = vmatpush2.msra.mxu0 0.0
    %99 = vmatprep.subr.mxu0 0.0
    %100 = vmatpush2.msra.mxu0 0.0
    %101 = vmatprep.subr.mxu0 0.0
    %102 = vmatpush2.msra.mxu0 0.0
    %103 = vmatprep.subr.mxu0 0.0
    %104 = vmatpush2.msra.mxu0 0.0
    %105 = vmatprep.subr.mxu0 0.0
    %106 = vmatpush2.msra.mxu0 0.0
    %107 = vmatprep.mubr.f32.mxu0 0.0
    %108 = vmatmul.mubr.f32.gmra.mxu0 %v41
    %v109 = vpop.f32.mrf.mxu0
    %v110 = vadd.f32 0.0, %v109
    %v111 = vpop.f32.mrf.mxu0
    %v112 = vadd.f32 0.0, %v111
    %113 = vdwg.mxu0
    %v114 = vmax.f32 %v110, 0.0
    %v115 = vmax.f32 %v112, 0.0
    %v118 = vcombine.low %v114, %v115
    %v120 = vunpack.c.l.s4 1983009808
    %v121 = vunpack.c.0.s8 %v120
    %v122 = vlaneseq
    %v123 = vshrl.u32 %v122, 7
    %v124 = vsub.s32 %v121, %v123
    %v125 = vrot.slane %v118, %v124
    %127 = vst [vmem:[#allocation7] sm:$0xf] %v125
    // Predicated region
    $region18: #{tpu_custom_call.1} parent=1 // pred_check
      _
    $region19: #{tpu_custom_call.1} parent=1 // pred_check_branch
      %129 = sbr.rel (0) target = $region21
    $region20: #{tpu_custom_call.1} parent=1 // pred_region
      %s131 = ssub.s32 64, 64
      %132 = vsyncadd [#allocation4], %s131
      %s134 = sshll.u32 [#allocation7], 4
      %s135 = int_to_ptr.vmem [resolvable:$true] %s134
      %137 = dma.vmem_to_hbm [thread:$0]  %s135, 64, %s2, [#allocation4]
    $region21: #{tpu_custom_call.1} parent=1 // pred_fallthru
      _
    // Predicated region
    $region22: #{tpu_custom_call.1} parent=1 // pred_check
      _
    $region23: #{tpu_custom_call.1} parent=1 // pred_check_branch
      %139 = sbr.rel (0) target = $region25
    $region24: #{tpu_custom_call.1} parent=1 // pred_region
      %140 = dma.done [#allocation4], 64
    $region25: #{tpu_custom_call.1} parent=1 // pred_fallthru
      _
    %141 = vsyncpa [#allocation3], 1
    %142 = vsyncpa [#allocation6], 1
    %143 = vsyncpa [#allocation4], 1

</llo_original>
